<compile_context>
chip_gen: v7x
topology: tpu7x:2x2x1
jax: 0.10.0
libtpu: 0.0.40
codegen_flags: <defaults>
</compile_context>

<pallas_src>
import jax
import jax.numpy as jnp
import numpy as np
from jax.experimental import pallas as pl
from jax.experimental.pallas import tpu as pltpu

KSIZE = 3                 # stride=1 branch of conv_block -> kernel 3, padding 1
NTAPS = KSIZE * KSIZE


def _make_kernel(H, W):
    """Kernel closure over static spatial dims."""
    HW = H * W

    def kernel(x_ref, m_ref, w_ref, b_ref, o_ref):
        # x_ref: (1, Cin, H*W)   f32, one batch element, spatial dims flattened
        # m_ref: (9, H*W)        f32 {0,1} per-tap validity mask ("same" padding)
        # w_ref: (Cout, 9*Cin)   bf16, rows ordered (kh, kw, ci)
        # b_ref: (Cout, 1)       f32
        # o_ref: (1, Cout, H*W)  f32  -> lane-dense store (H*W lanes)
        x = x_ref[0]                                     # (Cin, HW) f32
        cin = x.shape[0]

        # Build im2col (9*Cin, HW).  A spatial shift (dh, dw) is a flat shift
        # of s = dh*W + dw in the row-major flattened layout; static lane
        # shifts (XLU) with zero fill + the precomputed mask reproduce the
        # padding=1 boundary exactly.
        taps = []
        for kh in range(KSIZE):
            for kw in range(KSIZE):
                s = (kh - 1) * W + (kw - 1)
                if s == 0:
                    shifted = x
                elif s > 0:                              # y[:, p] = x[:, p + s]
                    shifted = jnp.concatenate(
                        [x[:, s:], jnp.zeros((cin, s), x.dtype)], axis=1)
                else:
                    shifted = jnp.concatenate(
                        [jnp.zeros((cin, -s), x.dtype), x[:, :s]], axis=1)
                t = kh * KSIZE + kw
                mask = m_ref[pl.ds(t, 1), :]             # (1, HW), 0/1 in f32
                taps.append(shifted * mask)              # (Cin, HW) f32
        im2col = jnp.concatenate(taps, axis=0)           # (9*Cin, HW) f32

        # One MXU push: (Cout, 9*Cin) @ (9*Cin, HW), bf16 operands, f32 acc.
        acc = jnp.dot(w_ref[...], im2col.astype(jnp.bfloat16),
                      preferred_element_type=jnp.float32)   # (Cout, HW) f32

        # Epilogue in f32: bias + LeakyReLU(0.2); lane-dense store.
        acc = acc + b_ref[...]                           # (Cout,1) bcast over HW
        out = jnp.where(acc > 0, acc, 0.2 * acc)
        o_ref[0] = out.astype(o_ref.dtype)

    return kernel


def conv_block_forward(x_nchw, weight, bias):
    """Conv2d(Cin, Cout, k=3, stride=1, padding=1) + LeakyReLU(0.2), NCHW.

    x_nchw: (N, Cin, H, W) float32
    weight: (Cout, Cin, 3, 3) float32 (PyTorch layout)
    bias:   (Cout,) float32
    returns (N, Cout, H, W) float32
    """
    N, Cin, H, W = x_nchw.shape
    Cout = weight.shape[0]
    HW = H * W

    # --- glue: only trailing-dim reshapes (free) + tiny weight/bias/mask prep ---
    x_flat = x_nchw.reshape(N, Cin, HW)                          # (N, Cin, HW)

    # (Cout, Cin, 3, 3) -> (Cout, kh, kw, ci) -> (Cout, 9*Cin), bf16 MXU operand.
    w2 = jnp.transpose(weight, (0, 2, 3, 1)).reshape(Cout, NTAPS * Cin)
    w2 = w2.astype(jnp.bfloat16)
    b2 = bias.reshape(Cout, 1).astype(jnp.float32)

    # Per-tap validity masks for padding=1, built at trace time with numpy
    # (9 * HW floats, loaded once into VMEM; avoids in-kernel div/mod).
    p = np.arange(HW)
    hh, ww = p // W, p % W
    masks = np.empty((NTAPS, HW), np.float32)
    for kh in range(KSIZE):
        for kw in range(KSIZE):
            dh, dw = kh - 1, kw - 1
            valid = ((hh + dh >= 0) & (hh + dh < H) &
                     (ww + dw >= 0) & (ww + dw < W))
            masks[kh * KSIZE + kw] = valid.astype(np.float32)
    masks = jnp.asarray(masks)

    out_flat = pl.pallas_call(
        _make_kernel(H, W),
        out_shape=jax.ShapeDtypeStruct((N, Cout, HW), x_nchw.dtype),
        grid_spec=pltpu.PrefetchScalarGridSpec(
            num_scalar_prefetch=0,
            grid=(N,),
            in_specs=[
                pl.BlockSpec((1, Cin, HW), lambda n: (n, 0, 0)),
                pl.BlockSpec((NTAPS, HW), lambda n: (0, 0)),
                pl.BlockSpec((Cout, NTAPS * Cin), lambda n: (0, 0)),
                pl.BlockSpec((Cout, 1), lambda n: (0, 0)),
            ],
            out_specs=pl.BlockSpec((1, Cout, HW), lambda n: (n, 0, 0)),
        ),
        compiler_params=pltpu.CompilerParams(
            dimension_semantics=("parallel",)),
    )(x_flat, masks, w2, b2)

    return out_flat.reshape(N, Cout, H, W)


if __name__ == "__main__":
    # conv_block(dim=2, in_channels=4, out_channels=8, stride=1)
    N, Cin, Cout, H, W = 2, 4, 8, 16, 16

    key = jax.random.PRNGKey(0)
    kx, kw_, kb = jax.random.split(key, 3)
    x = jax.random.normal(kx, (N, Cin, H, W), dtype=jnp.float32)
    weight = 0.1 * jax.random.normal(kw_, (Cout, Cin, KSIZE, KSIZE),
                                     dtype=jnp.float32)
    bias = 0.1 * jax.random.normal(kb, (Cout,), dtype=jnp.float32)

    out = conv_block_forward(x, weight, bias)
    out = jax.block_until_ready(out)

    # Reference: XLA conv (same semantics as torch Conv2d NCHW) + LeakyReLU.
    ref = jax.lax.conv_general_dilated(
        x, weight, window_strides=(1, 1), padding=((1, 1), (1, 1)),
        dimension_numbers=('NCHW', 'OIHW', 'NCHW'))
    ref = ref + bias.reshape(1, Cout, 1, 1)
    ref = jnp.where(ref > 0, ref, 0.2 * ref)

    assert out.shape == (N, Cout, H, W)
    # bf16 MXU operands (f32 accumulation) -> loosened tolerance vs pure-f32 ref.
    max_err = float(jnp.max(jnp.abs(out - ref)))
    assert jnp.allclose(out, ref, atol=5e-2, rtol=5e-2), max_err

    print("KERNEL_OK")
</pallas_src>

<mosaic_0001>
module attributes {stable_mosaic.version = 11 : i64} {
  func.func @kernel(%arg0: i32, %arg1: memref<1x4x256xf32, #tpu.memory_space<vmem>>, %arg2: memref<9x256xf32, #tpu.memory_space<vmem>>, %arg3: memref<8x36xbf16, #tpu.memory_space<vmem>>, %arg4: memref<8x1xf32, #tpu.memory_space<vmem>>, %arg5: memref<1x8x256xf32, #tpu.memory_space<vmem>>) attributes {dimension_semantics = [#tpu.dimension_semantics<parallel>], iteration_bounds = array<i64: 2>, scalar_prefetch = 0 : i64, scratch_operands = 0 : i64, tpu.core_type = #tpu.core_type<tc>, window_params = [{transform_indices = @transform_0, window_bounds = array<i64: 1, 4, 256>}, {pipeline_mode = #tpu.pipeline_mode<synchronous>, transform_indices = @transform_1, window_bounds = array<i64: 9, 256>}, {pipeline_mode = #tpu.pipeline_mode<synchronous>, transform_indices = @transform_2, window_bounds = array<i64: 8, 36>}, {pipeline_mode = #tpu.pipeline_mode<synchronous>, transform_indices = @transform_3, window_bounds = array<i64: 8, 1>}, {transform_indices = @transform_4, window_bounds = array<i64: 1, 8, 256>}]} {
    %c0 = arith.constant 0 : index
    %c0_0 = arith.constant 0 : index
    %c0_1 = arith.constant 0 : index
    %0 = vector.load %arg1[%c0, %c0_0, %c0_1] : memref<1x4x256xf32, #tpu.memory_space<vmem>>, vector<1x4x256xf32>
    %1 = vector.shape_cast %0 : vector<1x4x256xf32> to vector<4x256xf32>
    %cst = arith.constant 0.000000e+00 : f32
    %2 = vector.broadcast %cst : f32 to vector<4x17xf32>
    %3 = vector.extract_strided_slice %1 {offsets = [0, 0], sizes = [4, 239], strides = [1, 1]} : vector<4x256xf32> to vector<4x239xf32>
    %4 = tpu.concatenate %2, %3 in 1 : vector<4x17xf32>, vector<4x239xf32> -> vector<4x256xf32>
    %c0_2 = arith.constant 0 : index
    %c0_3 = arith.constant 0 : index
    %5 = vector.load %arg2[%c0_2, %c0_3] : memref<9x256xf32, #tpu.memory_space<vmem>>, vector<1x256xf32>
    %6 = vector.broadcast %5 : vector<1x256xf32> to vector<4x256xf32>
    %7 = arith.mulf %4, %6 : vector<4x256xf32>
    %cst_4 = arith.constant 0.000000e+00 : f32
    %8 = vector.broadcast %cst_4 : f32 to vector<4x16xf32>
    %9 = vector.extract_strided_slice %1 {offsets = [0, 0], sizes = [4, 240], strides = [1, 1]} : vector<4x256xf32> to vector<4x240xf32>
    %10 = tpu.concatenate %8, %9 in 1 : vector<4x16xf32>, vector<4x240xf32> -> vector<4x256xf32>
    %c1 = arith.constant 1 : index
    %c0_5 = arith.constant 0 : index
    %11 = vector.load %arg2[%c1, %c0_5] : memref<9x256xf32, #tpu.memory_space<vmem>>, vector<1x256xf32>
    %12 = vector.broadcast %11 : vector<1x256xf32> to vector<4x256xf32>
    %13 = arith.mulf %10, %12 : vector<4x256xf32>
    %cst_6 = arith.constant 0.000000e+00 : f32
    %14 = vector.broadcast %cst_6 : f32 to vector<4x15xf32>
    %15 = vector.extract_strided_slice %1 {offsets = [0, 0], sizes = [4, 241], strides = [1, 1]} : vector<4x256xf32> to vector<4x241xf32>
    %16 = tpu.concatenate %14, %15 in 1 : vector<4x15xf32>, vector<4x241xf32> -> vector<4x256xf32>
    %c2 = arith.constant 2 : index
    %c0_7 = arith.constant 0 : index
    %17 = vector.load %arg2[%c2, %c0_7] : memref<9x256xf32, #tpu.memory_space<vmem>>, vector<1x256xf32>
    %18 = vector.broadcast %17 : vector<1x256xf32> to vector<4x256xf32>
    %19 = arith.mulf %16, %18 : vector<4x256xf32>
    %cst_8 = arith.constant 0.000000e+00 : f32
    %20 = vector.broadcast %cst_8 : f32 to vector<4x1xf32>
    %21 = vector.extract_strided_slice %1 {offsets = [0, 0], sizes = [4, 255], strides = [1, 1]} : vector<4x256xf32> to vector<4x255xf32>
    %22 = tpu.concatenate %20, %21 in 1 : vector<4x1xf32>, vector<4x255xf32> -> vector<4x256xf32>
    %c3 = arith.constant 3 : index
    %c0_9 = arith.constant 0 : index
    %23 = vector.load %arg2[%c3, %c0_9] : memref<9x256xf32, #tpu.memory_space<vmem>>, vector<1x256xf32>
    %24 = vector.broadcast %23 : vector<1x256xf32> to vector<4x256xf32>
    %25 = arith.mulf %22, %24 : vector<4x256xf32>
    %c4 = arith.constant 4 : index
    %c0_10 = arith.constant 0 : index
    %26 = vector.load %arg2[%c4, %c0_10] : memref<9x256xf32, #tpu.memory_space<vmem>>, vector<1x256xf32>
    %27 = vector.broadcast %26 : vector<1x256xf32> to vector<4x256xf32>
    %28 = arith.mulf %1, %27 : vector<4x256xf32>
    %29 = vector.extract_strided_slice %1 {offsets = [0, 1], sizes = [4, 255], strides = [1, 1]} : vector<4x256xf32> to vector<4x255xf32>
    %cst_11 = arith.constant 0.000000e+00 : f32
    %30 = vector.broadcast %cst_11 : f32 to vector<4x1xf32>
    %31 = tpu.concatenate %29, %30 in 1 : vector<4x255xf32>, vector<4x1xf32> -> vector<4x256xf32>
    %c5 = arith.constant 5 : index
    %c0_12 = arith.constant 0 : index
    %32 = vector.load %arg2[%c5, %c0_12] : memref<9x256xf32, #tpu.memory_space<vmem>>, vector<1x256xf32>
    %33 = vector.broadcast %32 : vector<1x256xf32> to vector<4x256xf32>
    %34 = arith.mulf %31, %33 : vector<4x256xf32>
    %35 = vector.extract_strided_slice %1 {offsets = [0, 15], sizes = [4, 241], strides = [1, 1]} : vector<4x256xf32> to vector<4x241xf32>
    %cst_13 = arith.constant 0.000000e+00 : f32
    %36 = vector.broadcast %cst_13 : f32 to vector<4x15xf32>
    %37 = tpu.concatenate %35, %36 in 1 : vector<4x241xf32>, vector<4x15xf32> -> vector<4x256xf32>
    %c6 = arith.constant 6 : index
    %c0_14 = arith.constant 0 : index
    %38 = vector.load %arg2[%c6, %c0_14] : memref<9x256xf32, #tpu.memory_space<vmem>>, vector<1x256xf32>
    %39 = vector.broadcast %38 : vector<1x256xf32> to vector<4x256xf32>
    %40 = arith.mulf %37, %39 : vector<4x256xf32>
    %41 = vector.extract_strided_slice %1 {offsets = [0, 16], sizes = [4, 240], strides = [1, 1]} : vector<4x256xf32> to vector<4x240xf32>
    %cst_15 = arith.constant 0.000000e+00 : f32
    %42 = vector.broadcast %cst_15 : f32 to vector<4x16xf32>
    %43 = tpu.concatenate %41, %42 in 1 : vector<4x240xf32>, vector<4x16xf32> -> vector<4x256xf32>
    %c7 = arith.constant 7 : index
    %c0_16 = arith.constant 0 : index
    %44 = vector.load %arg2[%c7, %c0_16] : memref<9x256xf32, #tpu.memory_space<vmem>>, vector<1x256xf32>
    %45 = vector.broadcast %44 : vector<1x256xf32> to vector<4x256xf32>
    %46 = arith.mulf %43, %45 : vector<4x256xf32>
    %47 = vector.extract_strided_slice %1 {offsets = [0, 17], sizes = [4, 239], strides = [1, 1]} : vector<4x256xf32> to vector<4x239xf32>
    %cst_17 = arith.constant 0.000000e+00 : f32
    %48 = vector.broadcast %cst_17 : f32 to vector<4x17xf32>
    %49 = tpu.concatenate %47, %48 in 1 : vector<4x239xf32>, vector<4x17xf32> -> vector<4x256xf32>
    %c8 = arith.constant 8 : index
    %c0_18 = arith.constant 0 : index
    %50 = vector.load %arg2[%c8, %c0_18] : memref<9x256xf32, #tpu.memory_space<vmem>>, vector<1x256xf32>
    %51 = vector.broadcast %50 : vector<1x256xf32> to vector<4x256xf32>
    %52 = arith.mulf %49, %51 : vector<4x256xf32>
    %53 = tpu.concatenate %7, %13, %19, %25, %28, %34, %40, %46, %52 in 0 : vector<4x256xf32>, vector<4x256xf32>, vector<4x256xf32>, vector<4x256xf32>, vector<4x256xf32>, vector<4x256xf32>, vector<4x256xf32>, vector<4x256xf32>, vector<4x256xf32> -> vector<36x256xf32>
    %c0_19 = arith.constant 0 : index
    %c0_20 = arith.constant 0 : index
    %54 = vector.load %arg3[%c0_19, %c0_20] : memref<8x36xbf16, #tpu.memory_space<vmem>>, vector<8x36xbf16>
    %55 = arith.truncf %53 : vector<36x256xf32> to vector<36x256xbf16>
    %cst_21 = arith.constant dense<0.000000e+00> : vector<8x256xf32>
    %56 = tpu.matmul %54, %55, %cst_21 {dimension_numbers = #tpu.dot_dimension_numbers<[1], [0], [0], [1], [0, 0, 1, 1], [], []>} : vector<8x36xbf16>, vector<36x256xbf16>, vector<8x256xf32> -> vector<8x256xf32>
    %c0_22 = arith.constant 0 : index
    %c0_23 = arith.constant 0 : index
    %57 = vector.load %arg4[%c0_22, %c0_23] : memref<8x1xf32, #tpu.memory_space<vmem>>, vector<8x1xf32>
    %58 = vector.broadcast %57 : vector<8x1xf32> to vector<8x256xf32>
    %59 = arith.addf %56, %58 : vector<8x256xf32>
    %cst_24 = arith.constant 0.000000e+00 : f32
    %60 = vector.broadcast %cst_24 : f32 to vector<8x256xf32>
    %61 = arith.cmpf ogt, %59, %60 : vector<8x256xf32>
    %cst_25 = arith.constant 2.000000e-01 : f32
    %62 = vector.broadcast %cst_25 : f32 to vector<8x256xf32>
    %63 = arith.mulf %62, %59 : vector<8x256xf32>
    %64 = arith.select %61, %59, %63 : vector<8x256xi1>, vector<8x256xf32>
    %c0_26 = arith.constant 0 : index
    %c0_27 = arith.constant 0 : index
    %c0_28 = arith.constant 0 : index
    %65 = vector.load %arg5[%c0_26, %c0_27, %c0_28] : memref<1x8x256xf32, #tpu.memory_space<vmem>>, vector<1x8x256xf32>
    %66 = vector.shape_cast %65 : vector<1x8x256xf32> to vector<8x256xf32>
    %67 = vector.shape_cast %64 : vector<8x256xf32> to vector<1x8x256xf32>
    tpu.vector_store %arg5[%c0_26, %c0_27, %c0_28], %67 {strides = array<i32>} : memref<1x8x256xf32, #tpu.memory_space<vmem>>, vector<1x8x256xf32>,
    return
  }
  func.func @transform_0(%arg0: i32) -> (i32, i32, i32) {
    %c0_i32 = arith.constant 0 : i32
    %c0_i32_0 = arith.constant 0 : i32
    %c0_i32_1 = arith.constant 0 : i32
    return %arg0, %c0_i32, %c0_i32_0 : i32, i32, i32
  }
  func.func @transform_1(%arg0: i32) -> (i32, i32) {
    %c0_i32 = arith.constant 0 : i32
    %c0_i32_0 = arith.constant 0 : i32
    %c0_i32_1 = arith.constant 0 : i32
    return %c0_i32, %c0_i32_0 : i32, i32
  }
  func.func @transform_2(%arg0: i32) -> (i32, i32) {
    %c0_i32 = arith.constant 0 : i32
    %c0_i32_0 = arith.constant 0 : i32
    %c0_i32_1 = arith.constant 0 : i32
    return %c0_i32, %c0_i32_0 : i32, i32
  }
  func.func @transform_3(%arg0: i32) -> (i32, i32) {
    %c0_i32 = arith.constant 0 : i32
    %c0_i32_0 = arith.constant 0 : i32
    %c0_i32_1 = arith.constant 0 : i32
    return %c0_i32, %c0_i32_0 : i32, i32
  }
  func.func @transform_4(%arg0: i32) -> (i32, i32, i32) {
    %c0_i32 = arith.constant 0 : i32
    %c0_i32_0 = arith.constant 0 : i32
    %c0_i32_1 = arith.constant 0 : i32
    return %arg0, %c0_i32, %c0_i32_0 : i32, i32, i32
  }
}

</mosaic_0001>

<llo_original>
// kernel: tpu_custom_call.1
$region0: #{tpu_custom_call.1}
  #allocation0 [shape = 'u32[]', space=smem, size = 0x4, offset = 0x4, fixed_abs, tag = 'smem constant byte address 0x4 - core index']
  #allocation1 [shape = 'u32[144,128]{1,0:T(1,128)}', space=vmem, size = 0x12000, scoped, tag = 'internal scratch']
  %s0 = inlined_call_operand.hbm [shape: f32[2,4,256], index: 0, kind: input, shape index: {}]
  %s1 = inlined_call_operand.hbm [shape: f32[9,256], index: 1, kind: input, shape index: {}]
  %s2 = inlined_call_operand.vmem [shape: bf16[8,36], index: 2, kind: input, shape index: {}]
  %s3 = inlined_call_operand.vmem [shape: f32[8,1], index: 3, kind: input, shape index: {}]
  %s4 = inlined_call_operand.hbm [shape: f32[2,8,256], index: 4, kind: output, shape index: {}]
  %s5 = sld [smem:[#allocation0]]
  $region57: #{tpu_custom_call.1} parent=0
    _
  %s7 = ssub.s32 1, %s5
  %s8 = scalar_select 0, %s7, %s5
  $region1: #{tpu_custom_call.1} parent=0
    #allocation2 [shape = 'u8[8192]{0}', space=vmem, size = 0x2000, scoped, tag = 'input window, operand 0']
    #allocation3 [shape = 's32[2]{0}', space=sflag, size = 0x8, scoped, tag = 'scoped memory for tpu_custom_call.1']
    #allocation4 [shape = 's32[2]{0}', space=sflag, size = 0x8, scoped, tag = 'scoped memory for tpu_custom_call.1']
    #allocation5 [shape = 'u8[16384]{0}', space=vmem, size = 0x4000, scoped, tag = 'input window, operand 1, single buffered']
    #allocation6 [shape = 's32[1]{0}', space=sflag, size = 0x4, scoped, tag = 'scoped memory for tpu_custom_call.1']
    #allocation7 [shape = 'u8[16384]{0}', space=vmem, size = 0x4000, scoped, tag = 'output window, operand 0']
    %9 = vsyncpa [#allocation3], 0
    %s10 = scalar_lea.sflag [#allocation3], 1
    %11 = vsyncpa %s10, 0
    %12 = vsyncpa [#allocation6], 0
    %13 = vsyncpa [#allocation4], 0
    %s14 = scalar_lea.sflag [#allocation4], 1
    %15 = vsyncpa %s14, 0
    loop: start=0, step=1, limit=4
    $region2: #{tpu_custom_call.1} parent=1 // loop_pre_header
      _
    $region3: #{tpu_custom_call.1} parent=1 // loop_header
      %s17 = sphi 0, %s21
      %p18 = scmp.ge.s32.totalorder %s17, 4
      %s27 = sphi 0, %s29
      %s30 = sphi 0, %s27
      %s31 = sphi 0, %s30
      %s47 = sphi 0, %s31
      %s51 = sphi 0, %s51
      %s53 = sphi 0, %s51
      %s54 = sphi 0, %s53
      %s68 = sphi 0, %s54
      %s72 = sphi 0, %s72
      %s74 = sphi 0, %s72
      %s75 = sphi 0, %s74
      %s89 = sphi 0, %s75
      %s93 = sphi 0, %s93
      %s95 = sphi 0, %s93
      %s96 = sphi 0, %s95
      %s110 = sphi 0, %s96
      %s116 = sphi 0, %s118
      %s119 = sphi 0, %s116
      %s120 = sphi 0, %s119
      %s136 = sphi 0, %s120
    $region4: #{tpu_custom_call.1} parent=1 // loop_header_branch
      %20 = sbr.rel (%p18) target = $region8
    $region5: #{tpu_custom_call.1} parent=1 // loop_body
      %s22 = ssub.s32 %s17, 1
      %s23 = ssub.s32 %s17, 2
      %s24 = sadd.s32 %s17, 1
      %s25 = ssub.s32 %s17, %s24
      %p26 = scmp.eq.s32.totalorder %s25, 0
      %s28 = sadd.s32 %s27, 1
      %s29 = scalar_select %p26, %s27, %s28
      %p32 = pneg %p26
      %p33 = scmp.eq.s32.totalorder %s17, 1
      %p34 = por %p32, %p33
      %p35 = scmp.ne.s32.totalorder %s27, %s30
      %p36 = scmp.eq.s32.totalorder %s17, 0
      %p37 = por %p35, %p36
      %p38 = scmp.ne.s32.totalorder %s27, %s30
      %p39 = scmp.eq.s32.totalorder %s22, 1
      %p40 = por %p38, %p39
      %p41 = scmp.ne.s32.totalorder %s30, %s31
      %p42 = scmp.eq.s32.totalorder %s22, 0
      %p43 = por %p41, %p42
      %p44 = scmp.ne.s32.totalorder %s30, %s31
      %p45 = scmp.eq.s32.totalorder %s23, 1
      %p46 = por %p44, %p45
      %p48 = scmp.ne.s32.totalorder %s31, %s47
      %p49 = scmp.eq.s32.totalorder %s23, 0
      %p50 = por %p48, %p49
      %s52 = sadd.s32 %s51, 1
      %p55 = scmp.eq.s32.totalorder %s17, 1
      %p56 = scmp.ne.s32.totalorder %s51, %s53
      %p57 = scmp.eq.s32.totalorder %s17, 0
      %p58 = por %p56, %p57
      %p59 = scmp.ne.s32.totalorder %s51, %s53
      %p60 = scmp.eq.s32.totalorder %s22, 1
      %p61 = por %p59, %p60
      %p62 = scmp.ne.s32.totalorder %s53, %s54
      %p63 = scmp.eq.s32.totalorder %s22, 0
      %p64 = por %p62, %p63
      %p65 = scmp.ne.s32.totalorder %s53, %s54
      %p66 = scmp.eq.s32.totalorder %s23, 1
      %p67 = por %p65, %p66
      %p69 = scmp.ne.s32.totalorder %s54, %s68
      %p70 = scmp.eq.s32.totalorder %s23, 0
      %p71 = por %p69, %p70
      %s73 = sadd.s32 %s72, 1
      %p76 = scmp.eq.s32.totalorder %s17, 1
      %p77 = scmp.ne.s32.totalorder %s72, %s74
      %p78 = scmp.eq.s32.totalorder %s17, 0
      %p79 = por %p77, %p78
      %p80 = scmp.ne.s32.totalorder %s72, %s74
      %p81 = scmp.eq.s32.totalorder %s22, 1
      %p82 = por %p80, %p81
      %p83 = scmp.ne.s32.totalorder %s74, %s75
      %p84 = scmp.eq.s32.totalorder %s22, 0
      %p85 = por %p83, %p84
      %p86 = scmp.ne.s32.totalorder %s74, %s75
      %p87 = scmp.eq.s32.totalorder %s23, 1
      %p88 = por %p86, %p87
      %p90 = scmp.ne.s32.totalorder %s75, %s89
      %p91 = scmp.eq.s32.totalorder %s23, 0
      %p92 = por %p90, %p91
      %s94 = sadd.s32 %s93, 1
      %p97 = scmp.eq.s32.totalorder %s17, 1
      %p98 = scmp.ne.s32.totalorder %s93, %s95
      %p99 = scmp.eq.s32.totalorder %s17, 0
      %p100 = por %p98, %p99
      %p101 = scmp.ne.s32.totalorder %s93, %s95
      %p102 = scmp.eq.s32.totalorder %s22, 1
      %p103 = por %p101, %p102
      %p104 = scmp.ne.s32.totalorder %s95, %s96
      %p105 = scmp.eq.s32.totalorder %s22, 0
      %p106 = por %p104, %p105
      %p107 = scmp.ne.s32.totalorder %s95, %s96
      %p108 = scmp.eq.s32.totalorder %s23, 1
      %p109 = por %p107, %p108
      %p111 = scmp.ne.s32.totalorder %s96, %s110
      %p112 = scmp.eq.s32.totalorder %s23, 0
      %p113 = por %p111, %p112
      %s114 = ssub.s32 %s17, %s24
      %p115 = scmp.eq.s32.totalorder %s114, 0
      %s117 = sadd.s32 %s116, 1
      %s118 = scalar_select %p115, %s116, %s117
      %p121 = pneg %p115
      %p122 = scmp.eq.s32.totalorder %s17, 1
      %p123 = por %p121, %p122
      %p124 = scmp.ne.s32.totalorder %s116, %s119
      %p125 = scmp.eq.s32.totalorder %s17, 0
      %p126 = por %p124, %p125
      %p127 = scmp.ne.s32.totalorder %s116, %s119
      %p128 = scmp.eq.s32.totalorder %s22, 1
      %p129 = por %p127, %p128
      %p130 = scmp.ne.s32.totalorder %s119, %s120
      %p131 = scmp.eq.s32.totalorder %s22, 0
      %p132 = por %p130, %p131
      %p133 = scmp.ne.s32.totalorder %s119, %s120
      %p134 = scmp.eq.s32.totalorder %s23, 1
      %p135 = por %p133, %p134
      %p137 = scmp.ne.s32.totalorder %s120, %s136
      %p138 = scmp.eq.s32.totalorder %s23, 0
      %p139 = por %p137, %p138
      %p140 = scmp.le.s32.totalorder 1, %s17
      %p141 = scmp.lt.s32.totalorder %s17, 3
      %p142 = pnand %p140, %p141
      %p143 = pneg %p142
      // Predicated region
      $region9: #{tpu_custom_call.1} parent=5 // pred_check
        _
      $region10: #{tpu_custom_call.1} parent=5 // pred_check_branch
        %145 = sbr.rel (%p142) target = $region12
      $region11: #{tpu_custom_call.1} parent=5 // pred_region
        %s146 = ssub.s32 %s17, 1
        // Predicated region
        $region13: #{tpu_custom_call.1} parent=11 // pred_check
          %p147 = pneg %p64
        $region14: #{tpu_custom_call.1} parent=11 // pred_check_branch
          %149 = sbr.rel (%p147) target = $region16
        $region15: #{tpu_custom_call.1} parent=11 // pred_region
          %s151 = ssub.s32 512, 512
          %152 = vsyncadd [#allocation6], %s151
          %s153 = sshll.u32 [#allocation5], 4
          %s154 = int_to_ptr.vmem [resolvable:$true] %s153
          %159 = dma.hbm_to_vmem [thread:$0]  %s1, 512, %s154, [#allocation6], 256, 256, 16
        $region16: #{tpu_custom_call.1} parent=11 // pred_fallthru
          _
        // Predicated region
        $region17: #{tpu_custom_call.1} parent=11 // pred_check
          %p160 = pneg %p85
        $region18: #{tpu_custom_call.1} parent=11 // pred_check_branch
          %162 = sbr.rel (%p160) target = $region20
        $region19: #{tpu_custom_call.1} parent=11 // pred_region
          _
        $region20: #{tpu_custom_call.1} parent=11 // pred_fallthru
          _
        // Predicated region
        $region21: #{tpu_custom_call.1} parent=11 // pred_check
          %p163 = pneg %p106
        $region22: #{tpu_custom_call.1} parent=11 // pred_check_branch
          %165 = sbr.rel (%p163) target = $region24
        $region23: #{tpu_custom_call.1} parent=11 // pred_region
          _
        $region24: #{tpu_custom_call.1} parent=11 // pred_fallthru
          _
      $region12: #{tpu_custom_call.1} parent=5 // pred_fallthru
        _
      %p166 = scmp.lt.s32.totalorder %s17, 2
      // Predicated region
      $region25: #{tpu_custom_call.1} parent=5 // pred_check
        %p167 = pneg %p166
      $region26: #{tpu_custom_call.1} parent=5 // pred_check_branch
        %169 = sbr.rel (%p167) target = $region28
      $region27: #{tpu_custom_call.1} parent=5 // pred_region
        // Predicated region
        $region29: #{tpu_custom_call.1} parent=27 // pred_check
          %p170 = pneg %p37
        $region30: #{tpu_custom_call.1} parent=27 // pred_check_branch
          %172 = sbr.rel (%p170) target = $region32
        $region31: #{tpu_custom_call.1} parent=27 // pred_region
          %s173 = sand.u32 %s27, 1
          %s174 = scalar_lea.sflag [#allocation3], %s173
          %s175 = sand.u32 %s27, 1
          %s176 = smul.addr %s175, 8
          %s177 = scalar_lea.vmem [#allocation2], %s176
          %s179 = ssub.s32 128, 128
          %180 = vsyncadd %s174, %s179
          %s181 = smul.addr %s17, 2
          %s182 = smul.addr %s181, 64
          %s183 = scalar_lea.hbm %s0, %s182
          %s185 = sshll.u32 %s177, 4
          %s186 = int_to_ptr.vmem [resolvable:$true] %s185
          %188 = dma.hbm_to_vmem [thread:$0]  %s183, 128, %s186, %s174
        $region32: #{tpu_custom_call.1} parent=27 // pred_fallthru
          _
      $region28: #{tpu_custom_call.1} parent=5 // pred_fallthru
        _
      %p189 = scmp.le.s32.totalorder 1, %s17
      %p190 = scmp.lt.s32.totalorder %s17, 3
      %p191 = pnand %p189, %p190
      %p192 = pneg %p191
      // Predicated region
      $region33: #{tpu_custom_call.1} parent=5 // pred_check
        _
      $region34: #{tpu_custom_call.1} parent=5 // pred_check_branch
        %194 = sbr.rel (%p191) target = $region36
      $region35: #{tpu_custom_call.1} parent=5 // pred_region
        %s195 = ssub.s32 %s17, 1
        %s196 = sand.u32 %s30, 1
        %s197 = scalar_lea.sflag [#allocation3], %s196
        %s198 = sand.u32 %s30, 1
        %s199 = smul.addr %s198, 8
        %s200 = scalar_lea.vmem [#allocation2], %s199
        // Predicated region
        $region37: #{tpu_custom_call.1} parent=35 // pred_check
          %p201 = pneg %p43
        $region38: #{tpu_custom_call.1} parent=35 // pred_check_branch
          %203 = sbr.rel (%p201) target = $region40
        $region39: #{tpu_custom_call.1} parent=35 // pred_region
          %204 = dma.done %s197, 128
        $region40: #{tpu_custom_call.1} parent=35 // pred_fallthru
          _
        // Predicated region
        $region41: #{tpu_custom_call.1} parent=35 // pred_check
          %p205 = pneg %p64
        $region42: #{tpu_custom_call.1} parent=35 // pred_check_branch
          %207 = sbr.rel (%p205) target = $region44
        $region43: #{tpu_custom_call.1} parent=35 // pred_region
          %208 = dma.done [#allocation6], 512
        $region44: #{tpu_custom_call.1} parent=35 // pred_fallthru
          _
        %s209 = sand.u32 %s30, 1
        %s210 = scalar_lea.sflag [#allocation3], %s209
        %s211 = sand.u32 %s30, 1
        %s212 = smul.addr %s211, 8
        %s213 = scalar_lea.vmem [#allocation2], %s212
        %p214 = pneg %p43
        %p215 = pneg %p40
        %p216 = pneg %p64
        %p217 = pneg %p61
        %p218 = pneg %p85
        %p219 = pneg %p82
        %p220 = pneg %p106
        %p221 = pneg %p103
        %p222 = pneg %p132
        %p223 = pneg %p129
        %s224 = sand.u32 %s119, 1
        %s225 = scalar_lea.sflag [#allocation4], %s224
        %s226 = sand.u32 %s119, 1
        %s227 = smul.addr %s226, 16
        %s228 = scalar_lea.vmem [#allocation7], %s227
        %v230 = vld [vmem:[%s200] sm:$0xff]
        %v232 = vcombine.high %v230, %v230
        %233 = vrot.lane.b32.xlu0 %v230, 17
        %v234 = vpop.permute.xlu0 %233
        %235 = vrot.lane.b32.xlu0 %v232, 17
        %v236 = vpop.permute.xlu0 %235
        %vm237 = vcmask 138240
        %v238 = vsel %vm237, %v234, %v236
        %v241 = vsel %vm237, 0.0, %v234
        %v242 = vld [vmem:[#allocation5] ss:$8 sm:$0x3]
        %v244 = vlaneseq
        %v245 = vshrl.u32 %v244, 7
        %v246 = vsub.s32 0, %v245
        %v247 = vrot.slane %v242, %v246
        %v248 = vlaneseq
        %v249 = vshrl.u32 %v248, 7
        %v250 = vsub.s32 1, %v249
        %v251 = vrot.slane %v242, %v250
        %v254 = vmul.f32 %v241, %v247
        %v255 = vmul.f32 %v238, %v251
        %256 = vrot.lane.b32.xlu0 %v230, 16
        %v257 = vpop.permute.xlu0 %256
        %258 = vrot.lane.b32.xlu0 %v232, 16
        %v259 = vpop.permute.xlu0 %258
        %vm260 = vcmask 130048
        %v261 = vsel %vm260, %v257, %v259
        %v264 = vsel %vm260, 0.0, %v257
        %s265 = scalar_lea.vmem [#allocation5], 1
        %v266 = vld [vmem:[%s265] ss:$8 sm:$0x3]
        %v268 = vlaneseq
        %v269 = vshrl.u32 %v268, 7
        %v270 = vsub.s32 0, %v269
        %v271 = vrot.slane %v266, %v270
        %v272 = vlaneseq
        %v273 = vshrl.u32 %v272, 7
        %v274 = vsub.s32 1, %v273
        %v275 = vrot.slane %v266, %v274
        %v278 = vmul.f32 %v264, %v271
        %v279 = vmul.f32 %v261, %v275
        %280 = vrot.lane.b32.xlu0 %v230, 15
        %v281 = vpop.permute.xlu0 %280
        %282 = vrot.lane.b32.xlu0 %v232, 15
        %v283 = vpop.permute.xlu0 %282
        %vm284 = vcmask 121856
        %v285 = vsel %vm284, %v281, %v283
        %v288 = vsel %vm284, 0.0, %v281
        %s289 = scalar_lea.vmem [#allocation5], 2
        %v290 = vld [vmem:[%s289] ss:$8 sm:$0x3]
        %v292 = vlaneseq
        %v293 = vshrl.u32 %v292, 7
        %v294 = vsub.s32 0, %v293
        %v295 = vrot.slane %v290, %v294
        %v296 = vlaneseq
        %v297 = vshrl.u32 %v296, 7
        %v298 = vsub.s32 1, %v297
        %v299 = vrot.slane %v290, %v298
        %v302 = vmul.f32 %v288, %v295
        %v303 = vmul.f32 %v285, %v299
        %304 = vrot.lane.b32.xlu0 %v230, 1
        %v305 = vpop.permute.xlu0 %304
        %306 = vrot.lane.b32.xlu0 %v232, 1
        %v307 = vpop.permute.xlu0 %306
        %vm308 = vcmask 7168
        %v309 = vsel %vm308, %v305, %v307
        %v312 = vsel %vm308, 0.0, %v305
        %s313 = scalar_lea.vmem [#allocation5], 3
        %v314 = vld [vmem:[%s313] ss:$8 sm:$0x3]
        %v316 = vlaneseq
        %v317 = vshrl.u32 %v316, 7
        %v318 = vsub.s32 0, %v317
        %v319 = vrot.slane %v314, %v318
        %v320 = vlaneseq
        %v321 = vshrl.u32 %v320, 7
        %v322 = vsub.s32 1, %v321
        %v323 = vrot.slane %v314, %v322
        %v326 = vmul.f32 %v312, %v319
        %v327 = vmul.f32 %v309, %v323
        %s328 = scalar_lea.vmem [#allocation5], 4
        %v329 = vld [vmem:[%s328] ss:$8 sm:$0x3]
        %v331 = vlaneseq
        %v332 = vshrl.u32 %v331, 7
        %v333 = vsub.s32 0, %v332
        %v334 = vrot.slane %v329, %v333
        %v335 = vlaneseq
        %v336 = vshrl.u32 %v335, 7
        %v337 = vsub.s32 1, %v336
        %v338 = vrot.slane %v329, %v337
        %v339 = vcombine.low %v334, %v338
        %v341 = vmul.f32 %v230, %v339
        %342 = vrot.lane.b32.xlu0 %v230, 127
        %v343 = vpop.permute.xlu0 %342
        %344 = vrot.lane.b32.xlu0 %v232, 127
        %v345 = vpop.permute.xlu0 %344
        %vm346 = vcmask 1039360
        %v347 = vsel %vm346, %v343, %v345
        %v350 = vsel %vm346, %v345, 0.0
        %s351 = scalar_lea.vmem [#allocation5], 5
        %v352 = vld [vmem:[%s351] ss:$8 sm:$0x3]
        %v354 = vlaneseq
        %v355 = vshrl.u32 %v354, 7
        %v356 = vsub.s32 0, %v355
        %v357 = vrot.slane %v352, %v356
        %v358 = vlaneseq
        %v359 = vshrl.u32 %v358, 7
        %v360 = vsub.s32 1, %v359
        %v361 = vrot.slane %v352, %v360
        %v364 = vmul.f32 %v347, %v357
        %v365 = vmul.f32 %v350, %v361
        %366 = vrot.lane.b32.xlu0 %v230, 113
        %v367 = vpop.permute.xlu0 %366
        %368 = vrot.lane.b32.xlu0 %v232, 113
        %v369 = vpop.permute.xlu0 %368
        %vm370 = vcmask 924672
        %v371 = vsel %vm370, %v367, %v369
        %v374 = vsel %vm370, %v369, 0.0
        %s375 = scalar_lea.vmem [#allocation5], 6
        %v376 = vld [vmem:[%s375] ss:$8 sm:$0x3]
        %v378 = vlaneseq
        %v379 = vshrl.u32 %v378, 7
        %v380 = vsub.s32 0, %v379
        %v381 = vrot.slane %v376, %v380
        %v382 = vlaneseq
        %v383 = vshrl.u32 %v382, 7
        %v384 = vsub.s32 1, %v383
        %v385 = vrot.slane %v376, %v384
        %v388 = vmul.f32 %v371, %v381
        %v389 = vmul.f32 %v374, %v385
        %390 = vrot.lane.b32.xlu0 %v230, 112
        %v391 = vpop.permute.xlu0 %390
        %392 = vrot.lane.b32.xlu0 %v232, 112
        %v393 = vpop.permute.xlu0 %392
        %vm394 = vcmask 916480
        %v395 = vsel %vm394, %v391, %v393
        %v398 = vsel %vm394, %v393, 0.0
        %s399 = scalar_lea.vmem [#allocation5], 7
        %v400 = vld [vmem:[%s399] ss:$8 sm:$0x3]
        %v402 = vlaneseq
        %v403 = vshrl.u32 %v402, 7
        %v404 = vsub.s32 0, %v403
        %v405 = vrot.slane %v400, %v404
        %v406 = vlaneseq
        %v407 = vshrl.u32 %v406, 7
        %v408 = vsub.s32 1, %v407
        %v409 = vrot.slane %v400, %v408
        %v412 = vmul.f32 %v395, %v405
        %v413 = vmul.f32 %v398, %v409
        %414 = vrot.lane.b32.xlu0 %v230, 111
        %v415 = vpop.permute.xlu0 %414
        %416 = vrot.lane.b32.xlu0 %v232, 111
        %v417 = vpop.permute.xlu0 %416
        %vm418 = vcmask 908288
        %v419 = vsel %vm418, %v415, %v417
        %v422 = vsel %vm418, %v417, 0.0
        %s423 = scalar_lea.vmem [#allocation5], 16
        %v424 = vld [vmem:[%s423] ss:$8 sm:$0x3]
        %v426 = vlaneseq
        %v427 = vshrl.u32 %v426, 7
        %v428 = vsub.s32 0, %v427
        %v429 = vrot.slane %v424, %v428
        %v430 = vlaneseq
        %v431 = vshrl.u32 %v430, 7
        %v432 = vsub.s32 1, %v431
        %v433 = vrot.slane %v424, %v432
        %v436 = vmul.f32 %v419, %v429
        %v437 = vmul.f32 %v422, %v433
        %v440 = vrot.slane %v278, 4
        %v441 = vrot.slane %v279, 4
        %v446 = vrot.slane %v326, 4
        %v447 = vrot.slane %v327, 4
        %v451 = vcombine.high %v341, %v341
        %v455 = vrot.slane %v364, 4
        %v456 = vrot.slane %v365, 4
        %v461 = vrot.slane %v412, 4
        %v462 = vrot.slane %v413, 4
        %vm465 = vcmask 1043456
        %v466 = vsel %vm465, %v254, %v440
        %v467 = vsel %vm465, %v255, %v441
        %v468 = vsel %vm465, %v302, %v446
        %v469 = vsel %vm465, %v303, %v447
        %v470 = vsel %vm465, %v341, %v455
        %v471 = vsel %vm465, %v451, %v456
        %v472 = vsel %vm465, %v388, %v461
        %v473 = vsel %vm465, %v389, %v462
        %v474 = vld [vmem:[%s2] sm:$0xf]
        %v475 = vpack.c.bf16 %v468, %v466
        %v476 = vpack.c.bf16 %v469, %v467
        %v477 = vpack.c.bf16 %v472, %v470
        %v478 = vpack.c.bf16 %v473, %v471
        %v479 = vpack.c.bf16 %v436, %v436
        %v480 = vpack.c.bf16 %v437, %v437
        %v481 = vld [vmem:[%s3] sm:$0xff]
        %483 = vset.pattern.permute.xlu0 0
        %484 = vperm.xlu0 %483, %v481
        %v485 = vpop.permute.xlu0 %484
        %vm487 = vcmask 293888
        %v489 = vsel %vm487, %v474, 0
        %vm491 = vcmask 1041408
        %v493 = vsel %vm491, %v479, 0
        %v496 = vsel %vm491, %v480, 0
        %498 = vmatprep.subr.bf16.mxu0 %v476
        %499 = vmatpush1.bf16.msra.mxu0 %v475
        %500 = vmatprep.subr.bf16.mxu0 %v478
        %501 = vmatpush1.bf16.msra.mxu0 %v477
        %502 = vmatprep.subr.bf16.mxu0 %v496
        %503 = vmatpush1.bf16.msra.mxu0 %v493
        %504 = vmatprep.subr.bf16.mxu0 0
        %505 = vmatpush1.bf16.msra.mxu0 0
        %506 = vmatprep.subr.bf16.mxu0 0
        %507 = vmatpush1.bf16.msra.mxu0 0
        %508 = vmatprep.subr.bf16.mxu0 0
        %509 = vmatpush1.bf16.msra.mxu0 0
        %510 = vmatprep.subr.bf16.mxu0 0
        %511 = vmatpush1.bf16.msra.mxu0 0
        %512 = vmatprep.subr.bf16.mxu0 0
        %513 = vmatpush1.bf16.msra.mxu0 0
        %514 = vmatprep.subr.bf16.mxu0 0
        %515 = vmatpush1.bf16.msra.mxu0 0
        %516 = vmatprep.subr.bf16.mxu0 0
        %517 = vmatpush1.bf16.msra.mxu0 0
        %518 = vmatprep.subr.bf16.mxu0 0
        %519 = vmatpush1.bf16.msra.mxu0 0
        %520 = vmatprep.subr.bf16.mxu0 0
        %521 = vmatpush1.bf16.msra.mxu0 0
        %522 = vmatprep.subr.bf16.mxu0 0
        %523 = vmatpush1.bf16.msra.mxu0 0
        %524 = vmatprep.subr.bf16.mxu0 0
        %525 = vmatpush1.bf16.msra.mxu0 0
        %526 = vmatprep.subr.bf16.mxu0 0
        %527 = vmatpush1.bf16.msra.mxu0 0
        %528 = vmatprep.subr.bf16.mxu0 0
        %529 = vmatpush1.bf16.msra.mxu0 0
        %530 = vmatprep.mubr.bf16.mxu0 0
        %531 = vmatmul.mubr.bf16.gmra.mrb[0].mxu0 %v489
        %v532 = vpop.f32.mrb[0].mxu0
        %v533 = vadd.f32 %v485, %v532
        %v534 = vpop.f32.mrb[0].mxu0
        %v535 = vadd.f32 %v485, %v534
        %v536 = vpop.f32.mrb[0].mxu0
        %v537 = vpop.f32.mrb[0].mxu0
        %538 = vdwg.mxu0
        %vm539 = vcmp.gt.f32.partialorder %v533, 0.0
        %vm540 = vcmp.gt.f32.partialorder %v535, 0.0
        %v541 = vmul.f32 %v533, 0.2
        %v542 = vmul.f32 %v535, 0.2
        %v543 = vsel %vm539, %v533, %v541
        %v544 = vsel %vm540, %v535, %v542
        %545 = vst [vmem:[%s228] sm:$0xff] %v543
        %546 = vst [vmem:[%s228 + $0x8] sm:$0xff] %v544
        %s547 = sand.u32 %s119, 1
        %s548 = scalar_lea.sflag [#allocation4], %s547
        %s549 = sand.u32 %s119, 1
        %s550 = smul.addr %s549, 16
        %s551 = scalar_lea.vmem [#allocation7], %s550
        // Predicated region
        $region45: #{tpu_custom_call.1} parent=35 // pred_check
          %p552 = pneg %p129
        $region46: #{tpu_custom_call.1} parent=35 // pred_check_branch
          %554 = sbr.rel (%p552) target = $region48
        $region47: #{tpu_custom_call.1} parent=35 // pred_region
          %s556 = ssub.s32 256, 256
          %557 = vsyncadd %s548, %s556
          %s558 = smul.addr %s22, 2
          %s559 = smul.addr %s558, 128
          %s560 = scalar_lea.hbm %s4, %s559
          %s562 = sshll.u32 %s551, 4
          %s563 = int_to_ptr.vmem [resolvable:$true] %s562
          %565 = dma.vmem_to_hbm [thread:$0]  %s563, 256, %s560, %s548
        $region48: #{tpu_custom_call.1} parent=35 // pred_fallthru
          _
      $region36: #{tpu_custom_call.1} parent=5 // pred_fallthru
        _
      %p566 = scmp.le.s32.totalorder 2, %s17
      // Predicated region
      $region49: #{tpu_custom_call.1} parent=5 // pred_check
        %p567 = pneg %p566
      $region50: #{tpu_custom_call.1} parent=5 // pred_check_branch
        %569 = sbr.rel (%p567) target = $region52
      $region51: #{tpu_custom_call.1} parent=5 // pred_region
        %s570 = ssub.s32 %s17, 2
        // Predicated region
        $region53: #{tpu_custom_call.1} parent=51 // pred_check
          %p571 = pneg %p135
        $region54: #{tpu_custom_call.1} parent=51 // pred_check_branch
          %573 = sbr.rel (%p571) target = $region56
        $region55: #{tpu_custom_call.1} parent=51 // pred_region
          %s574 = sand.u32 %s120, 1
          %s575 = scalar_lea.sflag [#allocation4], %s574
          %s576 = sand.u32 %s120, 1
          %s577 = smul.addr %s576, 16
          %s578 = scalar_lea.vmem [#allocation7], %s577
          %579 = dma.done %s575, 256
        $region56: #{tpu_custom_call.1} parent=51 // pred_fallthru
          _
      $region52: #{tpu_custom_call.1} parent=5 // pred_fallthru
        _
    $region6: #{tpu_custom_call.1} parent=1 // loop_footer
      %s21 = sadd.s32 1, %s17
    $region7: #{tpu_custom_call.1} parent=1 // loop_footer_branch
      %16 = sbr.rel target = $region3
    $region8: #{tpu_custom_call.1} parent=1 // loop_exit
      _
    %580 = vsyncpa [#allocation3], 1
    %s581 = scalar_lea.sflag [#allocation3], 1
    %582 = vsyncpa %s581, 1
    %583 = vsyncpa [#allocation6], 1
    %584 = vsyncpa [#allocation4], 1
    %s585 = scalar_lea.sflag [#allocation4], 1
    %586 = vsyncpa %s585, 1

</llo_original>
